<compile_context>
chip_gen: v7x
topology: tpu7x:2x2x1
jax: 0.10.0
libtpu: 0.0.40
codegen_flags: <defaults>
</compile_context>

<pallas_src>
import functools

import jax
import jax.numpy as jnp
from jax.experimental import pallas as pl
from jax.experimental.pallas import tpu as pltpu

EPS = 1e-12
DIMS = 2                       # module config: normalize over the trailing 2 dims

_LANE = 128
_SUBLANE = 8
_CHUNK_TARGET_BYTES = 2 << 20  # per-chunk elementwise temporary budget


# ----------------------------------------------------------------------------
# shared closed-form statistics (used in-kernel and by the two-phase JAX glue)
# ----------------------------------------------------------------------------
def _blend_stats(rs, rs2, m, hidden, mw1, mw2, vw0, vw1, vw2, gamma):
    """Blended per-row mean and scale from per-row sums of x and x^2.

    rs, rs2, m: (..., S, 1) f32 (m is the 0/1 token mask, constant along H).
    Level-2 reduces over axis=-2 (S).  Returns (mean, scale), both (..., S, 1).
    """
    hf = float(hidden)

    # level 1: reduce over H, per token (closed form, mask is row-constant 0/1)
    num1 = hf * m + EPS
    sum1 = m * rs
    sumsq1 = m * rs2
    mean1 = sum1 / num1
    sq1 = sumsq1 - 2.0 * mean1 * sum1 + mean1 * mean1 * (num1 - EPS)
    sq1 = jnp.maximum(sq1, 0.0)              # guard one-pass cancellation
    var1 = sq1 / (num1 - 1.0)

    # level 2: reduce over S*H, per batch element (from the level-1 sums)
    num2 = jnp.sum(num1 - EPS, axis=-2, keepdims=True) + EPS
    sum2 = jnp.sum(sum1, axis=-2, keepdims=True)
    sumsq2 = jnp.sum(sumsq1, axis=-2, keepdims=True)
    mean2 = sum2 / num2
    sq2 = sumsq2 - 2.0 * mean2 * sum2 + mean2 * mean2 * (num2 - EPS)
    sq2 = jnp.maximum(sq2, 0.0)
    var2 = sq2 / (num2 - 1.0)

    mean = mw1 * mean1 + mw2 * mean2
    var = vw0 + vw1 * var1 + vw2 * var2
    scale = gamma * jax.lax.rsqrt(var + EPS)
    return mean, scale


# ----------------------------------------------------------------------------
# kernels
# ----------------------------------------------------------------------------
def _ltn_slab_kernel(gamma_ref, mw_ref, vw_ref, x_ref, m_ref, o_ref,
                     rs_ref, rs2_ref, *, s_chunk):
    """Single-HBM-pass path: one (Bt, S, H) slab per grid step.

    x_ref/o_ref: (Bt, S, H);  m_ref: (Bt, S, 1);  rs/rs2: (Bt, S, 1) f32 scratch.
    gamma_ref: (1,) SMEM;  mw_ref/vw_ref: (3,) SMEM (already softmaxed).
    """
    S = x_ref.shape[1]
    H = x_ref.shape[2]
    n_full = S // s_chunk
    rem = S - n_full * s_chunk

    # ---- pass 1: per-row sums, chunked over S so the x*x temporary never
    # exceeds one ~2 MiB chunk (instead of a slab-sized VMEM value) ----
    # TODO(synk): for H << 128 on v7x an MXU row-sum (dot with a ones column)
    # would offload the XLU cross-lane reduce; not worth the risk here.
    def reduce_rows(s0, nrows):
        xc = x_ref[:, pl.ds(s0, nrows), :].astype(jnp.float32)
        rs_ref[:, pl.ds(s0, nrows), :] = jnp.sum(xc, axis=-1, keepdims=True)
        rs2_ref[:, pl.ds(s0, nrows), :] = jnp.sum(xc * xc, axis=-1, keepdims=True)

    if n_full > 0:
        def rbody(c, carry):
            reduce_rows(pl.multiple_of(c * s_chunk, s_chunk), s_chunk)
            return carry
        jax.lax.fori_loop(0, n_full, rbody, 0, unroll=n_full <= 4)
    if rem > 0:
        reduce_rows(n_full * s_chunk, rem)

    # ---- per-row blended mean / scale (O(S) row-vector work) ----
    mean, scale = _blend_stats(
        rs_ref[...], rs2_ref[...], m_ref[...].astype(jnp.float32), H,
        mw_ref[1], mw_ref[2], vw_ref[0], vw_ref[1], vw_ref[2], gamma_ref[0])
    rs_ref[...] = mean          # reuse the row-sum scratch for the normalize pass
    rs2_ref[...] = scale

    # ---- pass 2: normalize, chunked over S ----
    def norm_rows(s0, nrows):
        xc = x_ref[:, pl.ds(s0, nrows), :].astype(jnp.float32)
        mc = rs_ref[:, pl.ds(s0, nrows), :]
        sc = rs2_ref[:, pl.ds(s0, nrows), :]
        o_ref[:, pl.ds(s0, nrows), :] = ((xc - mc) * sc).astype(o_ref.dtype)

    if n_full > 0:
        def nbody(c, carry):
            norm_rows(pl.multiple_of(c * s_chunk, s_chunk), s_chunk)
            return carry
        jax.lax.fori_loop(0, n_full, nbody, 0, unroll=n_full <= 4)
    if rem > 0:
        norm_rows(n_full * s_chunk, rem)


def _ltn_row_sums_kernel(x_ref, rs_ref, rs2_ref):
    """Two-phase path, phase 1: per-row sums of x and x^2 for one (1, st, H) tile."""
    x = x_ref[...].astype(jnp.float32)
    rs_ref[...] = jnp.sum(x, axis=-1, keepdims=True)
    rs2_ref[...] = jnp.sum(x * x, axis=-1, keepdims=True)


def _ltn_normalize_kernel(x_ref, mean_ref, scale_ref, o_ref):
    """Two-phase path, phase 2: (x - mean_row) * scale_row for one tile."""
    x = x_ref[...].astype(jnp.float32)
    o_ref[...] = ((x - mean_ref[...]) * scale_ref[...]).astype(o_ref.dtype)


# ----------------------------------------------------------------------------
# generation-aware VMEM budgeting / tiling
# ----------------------------------------------------------------------------
def _pad(n, m):
    return -(-n // m) * m


def _block_bytes(bt, s, h, itemsize):
    """VMEM footprint of one (bt, s, h) block (last two dims tile to (8k, 128))."""
    sub = max(_SUBLANE, 32 // max(1, itemsize))
    return bt * _pad(s, sub) * _pad(h, _LANE) * itemsize


def _rowvec_bytes(bt, s):
    """VMEM footprint of one (bt, s, 1) f32 block (lane dim pads 1 -> 128)."""
    return bt * _pad(s, _SUBLANE) * _LANE * 4


def _tpu_params():
    """(physical VMEM bytes per TensorCore, TensorCores per device), safe fallbacks."""
    kind = ""
    try:
        kind = jax.devices()[0].device_kind.lower()
    except Exception:
        pass
    is_v7 = "7" in kind
    vmem_cap = None
    try:
        vmem_cap = int(pltpu.get_tpu_info().vmem_capacity_bytes)
    except Exception:
        vmem_cap = None
    if vmem_cap is None or vmem_cap <= 0:
        vmem_cap = (64 << 20) if is_v7 else (128 << 20)
    if is_v7:
        vmem_cap = min(vmem_cap, 64 << 20)          # 64 MiB per TC on v7x
    # v4 / v5p / v7x expose two TensorCores per device; the grid needs >= 2
    # "parallel" steps for both to get work.  v5e / v6e have a single TC.
    n_cores = 2 if any(t in kind for t in ("v4", "v5p", "7")) else 1
    return vmem_cap, n_cores


def _pick_s_chunk(S, bt, H, target_bytes=_CHUNK_TARGET_BYTES):
    """Rows per in-kernel chunk; bounds elementwise temporaries to ~target_bytes."""
    if S <= _SUBLANE:
        return S
    rows = target_bytes // max(1, bt * _pad(H, _LANE) * 4)
    rows = min(S, rows)
    rows = max(_SUBLANE, (rows // _SUBLANE) * _SUBLANE)
    return int(min(rows, S))


def _slab_estimate(bt, S, H, s_chunk, in_itemsize, out_itemsize):
    """Honest per-grid-step VMEM estimate for the single-slab kernel."""
    slab_in = _block_bytes(bt, S, H, in_itemsize)
    slab_out = _block_bytes(bt, S, H, out_itemsize)
    rowvec = _rowvec_bytes(bt, S)
    chunk = _block_bytes(bt, s_chunk, H, 4)
    return (2 * slab_in + 2 * slab_out   # double-buffered x / out blocks
            + 2 * rowvec                 # double-buffered (bt,S,1) mask blocks
            + 2 * rowvec                 # rs / rs2 scratch
            + 8 * rowvec                 # live row-vector temporaries in the stats
            + 3 * chunk)                 # chunk-sized elementwise temporaries


def _choose_slab_tiling(B, S, H, in_itemsize, out_itemsize, budget, n_cores):
    """Largest batch tile whose estimate fits the budget, or None -> two-phase path."""
    est1 = _slab_estimate(1, S, H, _pick_s_chunk(S, 1, H), in_itemsize, out_itemsize)
    if est1 > budget:
        return None
    bt = int(min(B, max(1, budget // est1)))
    while bt > 1 and _slab_estimate(bt, S, H, _pick_s_chunk(S, bt, H),
                                    in_itemsize, out_itemsize) > budget:
        bt -= 1
    if n_cores > 1 and B > 1:
        bt = min(bt, pl.cdiv(B, n_cores))   # keep >= n_cores parallel grid steps
    bt = max(1, bt)
    return bt, _pick_s_chunk(S, bt, H)


def _choose_two_phase_st(S, H, in_itemsize, out_itemsize, budget):
    """Sequence-tile size for the S-tiled fallback path."""
    def estimate(st):
        return (2 * _block_bytes(1, st, H, in_itemsize)
                + 2 * _block_bytes(1, st, H, out_itemsize)
                + 6 * _rowvec_bytes(1, st)
                + 3 * _block_bytes(1, st, H, 4))
    st = S
    while st > _SUBLANE and estimate(st) > budget:
        st = max(_SUBLANE, (st // 2) // _SUBLANE * _SUBLANE)
    # TODO(synk): if even an 8-row x H tile exceeds the budget (enormous H),
    # an H-tiled inner loop would be needed as well; not required at sane H.
    return st


# ----------------------------------------------------------------------------
# public entry point
# ----------------------------------------------------------------------------
def learning_to_norm(x, mask, gamma, mean_weights, var_weights, *,
                     out_dtype=None, force_two_phase=False):
    """x: (B, S, H); mask: (B, S) 0/1 or None.  Returns (B, S, H)."""
    B, S, H = x.shape
    out_dtype = jnp.dtype(x.dtype if out_dtype is None else out_dtype)
    in_itemsize = jnp.dtype(x.dtype).itemsize

    # plain-JAX glue: softmax of the (dims+1,) weight vectors, mask/gamma prep
    mw = jax.nn.softmax(mean_weights.astype(jnp.float32))
    vw = jax.nn.softmax(var_weights.astype(jnp.float32))
    gamma = gamma.astype(jnp.float32).reshape(1)
    if mask is None:
        mask = jnp.ones((B, S), jnp.float32)
    mask3 = mask.astype(jnp.float32).reshape(B, S, 1)

    # TODO(synk): if H is not a multiple of 128 (lane width), output stores are
    # lane-masked; a lane-repacking prepass could help but is not worth the
    # extra HBM traffic for this bandwidth-bound op.

    vmem_cap, n_cores = _tpu_params()
    vmem_limit = int(vmem_cap * 3 // 4)      # explicit Mosaic VMEM ceiling
    budget = int(vmem_limit * 9 // 10)       # headroom for Mosaic internals

    tiling = None if force_two_phase else _choose_slab_tiling(
        B, S, H, in_itemsize, out_dtype.itemsize, budget, n_cores)

    if tiling is not None:
        # ---------------- single-slab path (x read from HBM exactly once) ----
        bt, s_chunk = tiling
        grid = (pl.cdiv(B, bt),)             # ragged last batch block is fine
        kernel = functools.partial(_ltn_slab_kernel, s_chunk=s_chunk)
        return pl.pallas_call(
            kernel,
            out_shape=jax.ShapeDtypeStruct((B, S, H), out_dtype),
            grid=grid,
            in_specs=[
                pl.BlockSpec(memory_space=pltpu.MemorySpace.SMEM),   # gamma
                pl.BlockSpec(memory_space=pltpu.MemorySpace.SMEM),   # mean weights
                pl.BlockSpec(memory_space=pltpu.MemorySpace.SMEM),   # var weights
                pl.BlockSpec((bt, S, H), lambda i: (i, 0, 0)),       # x
                pl.BlockSpec((bt, S, 1), lambda i: (i, 0, 0)),       # mask (per row)
            ],
            out_specs=pl.BlockSpec((bt, S, H), lambda i: (i, 0, 0)),
            scratch_shapes=[pltpu.VMEM((bt, S, 1), jnp.float32),     # rs -> mean
                            pltpu.VMEM((bt, S, 1), jnp.float32)],    # rs2 -> scale
            compiler_params=pltpu.CompilerParams(
                dimension_semantics=("parallel",),
                vmem_limit_bytes=vmem_limit),
        )(gamma, mw, vw, x, mask3)

    # ---------------- two-phase S-tiled fallback (slab does not fit VMEM) ----
    st = _choose_two_phase_st(S, H, in_itemsize, out_dtype.itemsize, budget)
    grid2 = (B, pl.cdiv(S, st))
    cp2 = pltpu.CompilerParams(dimension_semantics=("parallel", "parallel"),
                               vmem_limit_bytes=vmem_limit)

    rs, rs2 = pl.pallas_call(
        _ltn_row_sums_kernel,
        out_shape=(jax.ShapeDtypeStruct((B, S, 1), jnp.float32),
                   jax.ShapeDtypeStruct((B, S, 1), jnp.float32)),
        grid=grid2,
        in_specs=[pl.BlockSpec((1, st, H), lambda i, j: (i, j, 0))],
        out_specs=(pl.BlockSpec((1, st, 1), lambda i, j: (i, j, 0)),
                   pl.BlockSpec((1, st, 1), lambda i, j: (i, j, 0))),
        compiler_params=cp2,
    )(x)

    # tiny O(B*S) stats blend in plain JAX (same closed form as the slab kernel)
    mean, scale = _blend_stats(rs, rs2, mask3, H,
                               mw[1], mw[2], vw[0], vw[1], vw[2], gamma[0])

    return pl.pallas_call(
        _ltn_normalize_kernel,
        out_shape=jax.ShapeDtypeStruct((B, S, H), out_dtype),
        grid=grid2,
        in_specs=[pl.BlockSpec((1, st, H), lambda i, j: (i, j, 0)),
                  pl.BlockSpec((1, st, 1), lambda i, j: (i, j, 0)),
                  pl.BlockSpec((1, st, 1), lambda i, j: (i, j, 0))],
        out_specs=pl.BlockSpec((1, st, H), lambda i, j: (i, j, 0)),
        compiler_params=cp2,
    )(x, mean, scale)


# ----------------------------------------------------------------------------
# pure-JAX reference mirroring the PyTorch forward
# ----------------------------------------------------------------------------
def learning_to_norm_ref(x, mask, gamma, mean_weights, var_weights,
                         dims=DIMS, eps=EPS):
    maskf = jnp.broadcast_to(mask[..., None], x.shape).astype(x.dtype)
    mw = jax.nn.softmax(mean_weights)
    vw = jax.nn.softmax(var_weights)
    masked = x * maskf
    mean = jnp.zeros(x.shape[:-1] + (1,), x.dtype)
    var = jnp.full(x.shape[:-1] + (1,), vw[0], x.dtype)
    for i in range(1, dims + 1):
        shape = x.shape[:-i] + (-1,)
        v = masked.reshape(shape)
        mvw = maskf.reshape(shape)
        num = mvw.sum(-1, keepdims=True) + eps
        curr_mean = v.sum(-1, keepdims=True) / num
        diff = (v - curr_mean) * mvw
        curr_var = (diff ** 2).sum(-1, keepdims=True) / (num - 1.0)
        final_shape = x.shape[:-i] + (1,) * i
        mean = mean + mw[i] * curr_mean.reshape(final_shape)
        var = var + vw[i] * curr_var.reshape(final_shape)
    return gamma.reshape(()) * (x - mean) / jnp.sqrt(var + eps)


if __name__ == "__main__":
    B, S, H = 2, 8, 32
    key = jax.random.PRNGKey(0)

    x = jax.random.normal(key, (B, S, H), dtype=jnp.float32)
    # token mask: first few tokens valid, rest padded (deterministic pattern)
    valid = jnp.array([6, 8], dtype=jnp.int32)
    mask = (jnp.arange(S)[None, :] < valid[:, None]).astype(jnp.float32)

    # deterministic (non-trivial) parameters; shapes match nn.Module.__init__
    gamma = jnp.array([1.25], dtype=jnp.float32)                       # (1,)
    mean_weights = jnp.array([0.10, 0.30, -0.20], dtype=jnp.float32)   # (dims+1,)
    var_weights = jnp.array([-0.10, 0.25, 0.05], dtype=jnp.float32)    # (dims+1,)

    ref = learning_to_norm_ref(x, mask, gamma, mean_weights, var_weights)

    # default (single-slab) path
    out = jax.block_until_ready(
        learning_to_norm(x, mask, gamma, mean_weights, var_weights))
    assert out.shape == (B, S, H) and out.dtype == jnp.float32
    assert jnp.allclose(out, ref, atol=1e-5, rtol=1e-5), "single-slab path mismatch"

    # exercise the S-tiled two-phase fallback path as well
    out2 = jax.block_until_ready(
        learning_to_norm(x, mask, gamma, mean_weights, var_weights,
                         force_two_phase=True))
    assert jnp.allclose(out2, ref, atol=1e-5, rtol=1e-5), "two-phase path mismatch"

    print("KERNEL_OK")
</pallas_src>

<mosaic_0001>
module attributes {stable_mosaic.version = 11 : i64} {
  func.func @_ltn_slab_kernel(%arg0: i32, %arg1: memref<1xf32, #tpu.memory_space<smem>>, %arg2: memref<3xf32, #tpu.memory_space<smem>>, %arg3: memref<3xf32, #tpu.memory_space<smem>>, %arg4: memref<2x8x32xf32, #tpu.memory_space<vmem>>, %arg5: memref<2x8x1xf32, #tpu.memory_space<vmem>>, %arg6: memref<2x8x32xf32, #tpu.memory_space<vmem>>, %arg7: memref<2x8x1xf32, #tpu.memory_space<vmem>>, %arg8: memref<2x8x1xf32, #tpu.memory_space<vmem>>) attributes {dimension_semantics = [#tpu.dimension_semantics<parallel>], iteration_bounds = array<i64: 1>, scalar_prefetch = 0 : i64, scratch_operands = 2 : i64, tpu.core_type = #tpu.core_type<tc>, window_params = [{transform_indices = @transform_0, window_bounds = array<i64: 1>}, {transform_indices = @transform_1, window_bounds = array<i64: 3>}, {transform_indices = @transform_2, window_bounds = array<i64: 3>}, {transform_indices = @transform_3, window_bounds = array<i64: 2, 8, 32>}, {transform_indices = @transform_4, window_bounds = array<i64: 2, 8, 1>}, {transform_indices = @transform_5, window_bounds = array<i64: 2, 8, 32>}]} {
    %c0_i32 = arith.constant 0 : i32
    %c8_i32 = arith.constant 8 : i32
    %0 = arith.muli %c0_i32, %c8_i32 : i32
    %1 = tpu.assume_multiple %0, 8 : i32
    %c0 = arith.constant 0 : index
    %2 = arith.index_cast %1 : i32 to index
    %c0_0 = arith.constant 0 : index
    %3 = vector.load %arg4[%c0, %2, %c0_0] : memref<2x8x32xf32, #tpu.memory_space<vmem>>, vector<2x8x32xf32>
    %cst = arith.constant dense<0.000000e+00> : vector<2x8xf32>
    %4 = vector.multi_reduction <add>, %3, %cst [2] : vector<2x8x32xf32> to vector<2x8xf32>
    %5 = vector.shape_cast %4 : vector<2x8xf32> to vector<2x8x1xf32>
    %c0_1 = arith.constant 0 : index
    %6 = arith.index_cast %1 : i32 to index
    %c0_2 = arith.constant 0 : index
    %7 = vector.load %arg7[%c0_1, %6, %c0_2] : memref<2x8x1xf32, #tpu.memory_space<vmem>>, vector<2x8x1xf32>
    tpu.vector_store %arg7[%c0_1, %6, %c0_2], %5 {strides = array<i32>} : memref<2x8x1xf32, #tpu.memory_space<vmem>>, vector<2x8x1xf32>,
    %8 = arith.mulf %3, %3 : vector<2x8x32xf32>
    %cst_3 = arith.constant dense<0.000000e+00> : vector<2x8xf32>
    %9 = vector.multi_reduction <add>, %8, %cst_3 [2] : vector<2x8x32xf32> to vector<2x8xf32>
    %10 = vector.shape_cast %9 : vector<2x8xf32> to vector<2x8x1xf32>
    %c0_4 = arith.constant 0 : index
    %11 = arith.index_cast %1 : i32 to index
    %c0_5 = arith.constant 0 : index
    %12 = vector.load %arg8[%c0_4, %11, %c0_5] : memref<2x8x1xf32, #tpu.memory_space<vmem>>, vector<2x8x1xf32>
    tpu.vector_store %arg8[%c0_4, %11, %c0_5], %10 {strides = array<i32>} : memref<2x8x1xf32, #tpu.memory_space<vmem>>, vector<2x8x1xf32>,
    %c1_i32 = arith.constant 1 : i32
    %c0_6 = arith.constant 0 : index
    %c0_7 = arith.constant 0 : index
    %c0_8 = arith.constant 0 : index
    %13 = vector.load %arg7[%c0_6, %c0_7, %c0_8] : memref<2x8x1xf32, #tpu.memory_space<vmem>>, vector<2x8x1xf32>
    %c0_9 = arith.constant 0 : index
    %c0_10 = arith.constant 0 : index
    %c0_11 = arith.constant 0 : index
    %14 = vector.load %arg8[%c0_9, %c0_10, %c0_11] : memref<2x8x1xf32, #tpu.memory_space<vmem>>, vector<2x8x1xf32>
    %c0_12 = arith.constant 0 : index
    %c0_13 = arith.constant 0 : index
    %c0_14 = arith.constant 0 : index
    %15 = vector.load %arg5[%c0_12, %c0_13, %c0_14] : memref<2x8x1xf32, #tpu.memory_space<vmem>>, vector<2x8x1xf32>
    %c1 = arith.constant 1 : index
    %16 = memref.load %arg2[%c1] : memref<3xf32, #tpu.memory_space<smem>>
    %c2 = arith.constant 2 : index
    %17 = memref.load %arg2[%c2] : memref<3xf32, #tpu.memory_space<smem>>
    %c0_15 = arith.constant 0 : index
    %18 = memref.load %arg3[%c0_15] : memref<3xf32, #tpu.memory_space<smem>>
    %c1_16 = arith.constant 1 : index
    %19 = memref.load %arg3[%c1_16] : memref<3xf32, #tpu.memory_space<smem>>
    %c2_17 = arith.constant 2 : index
    %20 = memref.load %arg3[%c2_17] : memref<3xf32, #tpu.memory_space<smem>>
    %c0_18 = arith.constant 0 : index
    %21 = memref.load %arg1[%c0_18] : memref<1xf32, #tpu.memory_space<smem>>
    %cst_19 = arith.constant 3.200000e+01 : f32
    %22 = vector.broadcast %cst_19 : f32 to vector<2x8x1xf32>
    %23 = arith.mulf %22, %15 : vector<2x8x1xf32>
    %cst_20 = arith.constant 9.99999996E-13 : f32
    %24 = vector.broadcast %cst_20 : f32 to vector<2x8x1xf32>
    %25 = arith.addf %23, %24 : vector<2x8x1xf32>
    %26 = arith.mulf %15, %13 : vector<2x8x1xf32>
    %27 = arith.mulf %15, %14 : vector<2x8x1xf32>
    %28 = arith.divf %26, %25 : vector<2x8x1xf32>
    %cst_21 = arith.constant 2.000000e+00 : f32
    %29 = vector.broadcast %cst_21 : f32 to vector<2x8x1xf32>
    %30 = arith.mulf %29, %28 : vector<2x8x1xf32>
    %31 = arith.mulf %30, %26 : vector<2x8x1xf32>
    %32 = arith.subf %27, %31 : vector<2x8x1xf32>
    %33 = arith.mulf %28, %28 : vector<2x8x1xf32>
    %cst_22 = arith.constant 9.99999996E-13 : f32
    %34 = vector.broadcast %cst_22 : f32 to vector<2x8x1xf32>
    %35 = arith.subf %25, %34 : vector<2x8x1xf32>
    %36 = arith.mulf %33, %35 : vector<2x8x1xf32>
    %37 = arith.addf %32, %36 : vector<2x8x1xf32>
    %cst_23 = arith.constant 0.000000e+00 : f32
    %38 = vector.broadcast %cst_23 : f32 to vector<2x8x1xf32>
    %39 = arith.maximumf %37, %38 : vector<2x8x1xf32>
    %cst_24 = arith.constant 1.000000e+00 : f32
    %40 = vector.broadcast %cst_24 : f32 to vector<2x8x1xf32>
    %41 = arith.subf %25, %40 : vector<2x8x1xf32>
    %42 = arith.divf %39, %41 : vector<2x8x1xf32>
    %cst_25 = arith.constant 9.99999996E-13 : f32
    %43 = vector.broadcast %cst_25 : f32 to vector<2x8x1xf32>
    %44 = arith.subf %25, %43 : vector<2x8x1xf32>
    %cst_26 = arith.constant dense<0.000000e+00> : vector<2x1xf32>
    %45 = vector.multi_reduction <add>, %44, %cst_26 [1] : vector<2x8x1xf32> to vector<2x1xf32>
    %46 = vector.shape_cast %45 : vector<2x1xf32> to vector<2x1x1xf32>
    %cst_27 = arith.constant 9.99999996E-13 : f32
    %47 = vector.broadcast %cst_27 : f32 to vector<2x1x1xf32>
    %48 = arith.addf %46, %47 : vector<2x1x1xf32>
    %cst_28 = arith.constant dense<0.000000e+00> : vector<2x1xf32>
    %49 = vector.multi_reduction <add>, %26, %cst_28 [1] : vector<2x8x1xf32> to vector<2x1xf32>
    %50 = vector.shape_cast %49 : vector<2x1xf32> to vector<2x1x1xf32>
    %cst_29 = arith.constant dense<0.000000e+00> : vector<2x1xf32>
    %51 = vector.multi_reduction <add>, %27, %cst_29 [1] : vector<2x8x1xf32> to vector<2x1xf32>
    %52 = vector.shape_cast %51 : vector<2x1xf32> to vector<2x1x1xf32>
    %53 = arith.divf %50, %48 : vector<2x1x1xf32>
    %cst_30 = arith.constant 2.000000e+00 : f32
    %54 = vector.broadcast %cst_30 : f32 to vector<2x1x1xf32>
    %55 = arith.mulf %54, %53 : vector<2x1x1xf32>
    %56 = arith.mulf %55, %50 : vector<2x1x1xf32>
    %57 = arith.subf %52, %56 : vector<2x1x1xf32>
    %58 = arith.mulf %53, %53 : vector<2x1x1xf32>
    %cst_31 = arith.constant 9.99999996E-13 : f32
    %59 = vector.broadcast %cst_31 : f32 to vector<2x1x1xf32>
    %60 = arith.subf %48, %59 : vector<2x1x1xf32>
    %61 = arith.mulf %58, %60 : vector<2x1x1xf32>
    %62 = arith.addf %57, %61 : vector<2x1x1xf32>
    %cst_32 = arith.constant 0.000000e+00 : f32
    %63 = vector.broadcast %cst_32 : f32 to vector<2x1x1xf32>
    %64 = arith.maximumf %62, %63 : vector<2x1x1xf32>
    %cst_33 = arith.constant 1.000000e+00 : f32
    %65 = vector.broadcast %cst_33 : f32 to vector<2x1x1xf32>
    %66 = arith.subf %48, %65 : vector<2x1x1xf32>
    %67 = arith.divf %64, %66 : vector<2x1x1xf32>
    %68 = vector.broadcast %16 : f32 to vector<2x8x1xf32>
    %69 = arith.mulf %68, %28 : vector<2x8x1xf32>
    %70 = vector.broadcast %17 : f32 to vector<2x1x1xf32>
    %71 = arith.mulf %70, %53 : vector<2x1x1xf32>
    %72 = vector.broadcast %71 : vector<2x1x1xf32> to vector<2x8x1xf32>
    %73 = arith.addf %69, %72 : vector<2x8x1xf32>
    %74 = vector.broadcast %19 : f32 to vector<2x8x1xf32>
    %75 = arith.mulf %74, %42 : vector<2x8x1xf32>
    %76 = vector.broadcast %18 : f32 to vector<2x8x1xf32>
    %77 = arith.addf %76, %75 : vector<2x8x1xf32>
    %78 = vector.broadcast %20 : f32 to vector<2x1x1xf32>
    %79 = arith.mulf %78, %67 : vector<2x1x1xf32>
    %80 = vector.broadcast %79 : vector<2x1x1xf32> to vector<2x8x1xf32>
    %81 = arith.addf %77, %80 : vector<2x8x1xf32>
    %cst_34 = arith.constant 9.99999996E-13 : f32
    %82 = vector.broadcast %cst_34 : f32 to vector<2x8x1xf32>
    %83 = arith.addf %81, %82 : vector<2x8x1xf32>
    %84 = math.rsqrt %83 : vector<2x8x1xf32>
    %85 = vector.broadcast %21 : f32 to vector<2x8x1xf32>
    %86 = arith.mulf %85, %84 : vector<2x8x1xf32>
    %c0_35 = arith.constant 0 : index
    %c0_36 = arith.constant 0 : index
    %c0_37 = arith.constant 0 : index
    %87 = vector.load %arg7[%c0_35, %c0_36, %c0_37] : memref<2x8x1xf32, #tpu.memory_space<vmem>>, vector<2x8x1xf32>
    tpu.vector_store %arg7[%c0_35, %c0_36, %c0_37], %73 {strides = array<i32>} : memref<2x8x1xf32, #tpu.memory_space<vmem>>, vector<2x8x1xf32>,
    %c0_38 = arith.constant 0 : index
    %c0_39 = arith.constant 0 : index
    %c0_40 = arith.constant 0 : index
    %88 = vector.load %arg8[%c0_38, %c0_39, %c0_40] : memref<2x8x1xf32, #tpu.memory_space<vmem>>, vector<2x8x1xf32>
    tpu.vector_store %arg8[%c0_38, %c0_39, %c0_40], %86 {strides = array<i32>} : memref<2x8x1xf32, #tpu.memory_space<vmem>>, vector<2x8x1xf32>,
    %c0_i32_41 = arith.constant 0 : i32
    %c8_i32_42 = arith.constant 8 : i32
    %89 = arith.muli %c0_i32_41, %c8_i32_42 : i32
    %90 = tpu.assume_multiple %89, 8 : i32
    %c0_43 = arith.constant 0 : index
    %91 = arith.index_cast %90 : i32 to index
    %c0_44 = arith.constant 0 : index
    %92 = vector.load %arg4[%c0_43, %91, %c0_44] : memref<2x8x32xf32, #tpu.memory_space<vmem>>, vector<2x8x32xf32>
    %c0_45 = arith.constant 0 : index
    %93 = arith.index_cast %90 : i32 to index
    %c0_46 = arith.constant 0 : index
    %94 = vector.load %arg7[%c0_45, %93, %c0_46] : memref<2x8x1xf32, #tpu.memory_space<vmem>>, vector<2x8x1xf32>
    %c0_47 = arith.constant 0 : index
    %95 = arith.index_cast %90 : i32 to index
    %c0_48 = arith.constant 0 : index
    %96 = vector.load %arg8[%c0_47, %95, %c0_48] : memref<2x8x1xf32, #tpu.memory_space<vmem>>, vector<2x8x1xf32>
    %97 = vector.broadcast %94 : vector<2x8x1xf32> to vector<2x8x32xf32>
    %98 = arith.subf %92, %97 : vector<2x8x32xf32>
    %99 = vector.broadcast %96 : vector<2x8x1xf32> to vector<2x8x32xf32>
    %100 = arith.mulf %98, %99 : vector<2x8x32xf32>
    %c0_49 = arith.constant 0 : index
    %101 = arith.index_cast %90 : i32 to index
    %c0_50 = arith.constant 0 : index
    %102 = vector.load %arg6[%c0_49, %101, %c0_50] : memref<2x8x32xf32, #tpu.memory_space<vmem>>, vector<2x8x32xf32>
    tpu.vector_store %arg6[%c0_49, %101, %c0_50], %100 {strides = array<i32>} : memref<2x8x32xf32, #tpu.memory_space<vmem>>, vector<2x8x32xf32>,
    %c1_i32_51 = arith.constant 1 : i32
    return
  }
  func.func @transform_0(%arg0: i32) -> i32 {
    %c0_i32 = arith.constant 0 : i32
    %c0_i32_0 = arith.constant 0 : i32
    return %c0_i32 : i32
  }
  func.func @transform_1(%arg0: i32) -> i32 {
    %c0_i32 = arith.constant 0 : i32
    %c0_i32_0 = arith.constant 0 : i32
    return %c0_i32 : i32
  }
  func.func @transform_2(%arg0: i32) -> i32 {
    %c0_i32 = arith.constant 0 : i32
    %c0_i32_0 = arith.constant 0 : i32
    return %c0_i32 : i32
  }
  func.func @transform_3(%arg0: i32) -> (i32, i32, i32) {
    %c0_i32 = arith.constant 0 : i32
    %c0_i32_0 = arith.constant 0 : i32
    %c0_i32_1 = arith.constant 0 : i32
    return %arg0, %c0_i32, %c0_i32_0 : i32, i32, i32
  }
  func.func @transform_4(%arg0: i32) -> (i32, i32, i32) {
    %c0_i32 = arith.constant 0 : i32
    %c0_i32_0 = arith.constant 0 : i32
    %c0_i32_1 = arith.constant 0 : i32
    return %arg0, %c0_i32, %c0_i32_0 : i32, i32, i32
  }
  func.func @transform_5(%arg0: i32) -> (i32, i32, i32) {
    %c0_i32 = arith.constant 0 : i32
    %c0_i32_0 = arith.constant 0 : i32
    %c0_i32_1 = arith.constant 0 : i32
    return %arg0, %c0_i32, %c0_i32_0 : i32, i32, i32
  }
}

</mosaic_0001>

<llo_original>
// kernel: tpu_custom_call.1
$region0: #{tpu_custom_call.1}
  #allocation0 [shape = 'u32[]', space=smem, size = 0x4, offset = 0x4, fixed_abs, tag = 'smem constant byte address 0x4 - core index']
  #allocation1 [shape = 'u32[144,128]{1,0:T(1,128)}', space=vmem, size = 0x12000, scoped, tag = 'internal scratch']
  #allocation2 [shape = 'f32[2,8,1]{2,1,0:T(8,128)}', space=vmem, size = 0x2000, scoped, tag = 'scratch operand']
  #allocation3 [shape = 'f32[2,8,1]{2,1,0:T(8,128)}', space=vmem, size = 0x2000, scoped, tag = 'scratch operand']
  #allocation4 [shape = 'f32[1]{0:T(128)S(6)}', space=smem, size = 0x200, scoped, tag = 'scoped memory for tpu_custom_call.1']
  %s0 = inlined_call_operand.<no memory space> [shape: f32[1], index: 0, kind: input, shape index: {}]
  %s1 = inlined_call_operand.hbm [shape: f32[3], index: 1, kind: input, shape index: {}]
  %s2 = inlined_call_operand.hbm [shape: f32[3], index: 2, kind: input, shape index: {}]
  %s3 = inlined_call_operand.hbm [shape: f32[2,8,32], index: 3, kind: input, shape index: {}]
  %s4 = inlined_call_operand.hbm [shape: f32[2,8,1], index: 4, kind: input, shape index: {}]
  %s5 = inlined_call_operand.hbm [shape: f32[2,8,32], index: 5, kind: output, shape index: {}]
  %s6 = sld [smem:[#allocation0]]
  $region46: #{tpu_custom_call.1} parent=0
    _
  %s8 = ssub.s32 1, %s6
  %s9 = scalar_select 0, %s8, %s6
  %10 = sst [smem:[#allocation4]] %s0
  $region1: #{tpu_custom_call.1} parent=0
    #allocation5 [shape = 'u8[512]{0}', space=smem, size = 0x200, scoped, tag = 'input window, operand 1, single buffered']
    #allocation6 [shape = 's32[1]{0}', space=sflag, size = 0x4, scoped, tag = 'scoped memory for tpu_custom_call.1']
    #allocation7 [shape = 's32[1]{0}', space=sflag, size = 0x4, scoped, tag = 'scoped memory for tpu_custom_call.1']
    #allocation8 [shape = 's32[1]{0}', space=sflag, size = 0x4, scoped, tag = 'scoped memory for tpu_custom_call.1']
    #allocation9 [shape = 'u8[512]{0}', space=smem, size = 0x200, scoped, tag = 'input window, operand 2, single buffered']
    #allocation10 [shape = 's32[1]{0}', space=sflag, size = 0x4, scoped, tag = 'scoped memory for tpu_custom_call.1']
    #allocation11 [shape = 'u8[8192]{0}', space=vmem, size = 0x2000, scoped, tag = 'input window, operand 3, single buffered']
    #allocation12 [shape = 'u8[8192]{0}', space=vmem, size = 0x2000, scoped, tag = 'input window, operand 4, single buffered']
    #allocation13 [shape = 's32[1]{0}', space=sflag, size = 0x4, scoped, tag = 'scoped memory for tpu_custom_call.1']
    #allocation14 [shape = 'u8[8192]{0}', space=vmem, size = 0x2000, scoped, tag = 'output window, operand 0, single buffered']
    %11 = vsyncpa [#allocation8], 0
    %12 = vsyncpa [#allocation10], 0
    %13 = vsyncpa [#allocation6], 0
    %14 = vsyncpa [#allocation13], 0
    %15 = vsyncpa [#allocation7], 0
    // Predicated region
    $region2: #{tpu_custom_call.1} parent=1 // pred_check
      _
    $region3: #{tpu_custom_call.1} parent=1 // pred_check_branch
      %17 = sbr.rel (0) target = $region5
    $region4: #{tpu_custom_call.1} parent=1 // pred_region
      _
    $region5: #{tpu_custom_call.1} parent=1 // pred_fallthru
      _
    // Predicated region
    $region6: #{tpu_custom_call.1} parent=1 // pred_check
      _
    $region7: #{tpu_custom_call.1} parent=1 // pred_check_branch
      %19 = sbr.rel (0) target = $region9
    $region8: #{tpu_custom_call.1} parent=1 // pred_region
      %s21 = ssub.s32 16, 16
      %22 = vsyncadd [#allocation8], %s21
      %25 = dma.hbm_to_smem %s1, 16, [#allocation5], [#allocation8]
    $region9: #{tpu_custom_call.1} parent=1 // pred_fallthru
      _
    // Predicated region
    $region10: #{tpu_custom_call.1} parent=1 // pred_check
      _
    $region11: #{tpu_custom_call.1} parent=1 // pred_check_branch
      %27 = sbr.rel (0) target = $region13
    $region12: #{tpu_custom_call.1} parent=1 // pred_region
      %s29 = ssub.s32 16, 16
      %30 = vsyncadd [#allocation10], %s29
      %33 = dma.hbm_to_smem %s2, 16, [#allocation9], [#allocation10]
    $region13: #{tpu_custom_call.1} parent=1 // pred_fallthru
      _
    // Predicated region
    $region14: #{tpu_custom_call.1} parent=1 // pred_check
      _
    $region15: #{tpu_custom_call.1} parent=1 // pred_check_branch
      %35 = sbr.rel (0) target = $region17
    $region16: #{tpu_custom_call.1} parent=1 // pred_region
      %s37 = ssub.s32 256, 256
      %38 = vsyncadd [#allocation6], %s37
      %s39 = sshll.u32 [#allocation11], 4
      %s40 = int_to_ptr.vmem [resolvable:$true] %s39
      %45 = dma.hbm_to_vmem [thread:$0]  %s3, 256, %s40, [#allocation6], 128, 128, 8
    $region17: #{tpu_custom_call.1} parent=1 // pred_fallthru
      _
    // Predicated region
    $region18: #{tpu_custom_call.1} parent=1 // pred_check
      _
    $region19: #{tpu_custom_call.1} parent=1 // pred_check_branch
      %47 = sbr.rel (0) target = $region21
    $region20: #{tpu_custom_call.1} parent=1 // pred_region
      %s49 = ssub.s32 256, 256
      %50 = vsyncadd [#allocation13], %s49
      %s51 = sshll.u32 [#allocation12], 4
      %s52 = int_to_ptr.vmem [resolvable:$true] %s51
      %57 = dma.hbm_to_vmem [thread:$0]  %s4, 256, %s52, [#allocation13], 128, 128, 8
    $region21: #{tpu_custom_call.1} parent=1 // pred_fallthru
      _
    // Predicated region
    $region22: #{tpu_custom_call.1} parent=1 // pred_check
      _
    $region23: #{tpu_custom_call.1} parent=1 // pred_check_branch
      %59 = sbr.rel (0) target = $region25
    $region24: #{tpu_custom_call.1} parent=1 // pred_region
      %60 = dma.done [#allocation8], 16
    $region25: #{tpu_custom_call.1} parent=1 // pred_fallthru
      _
    // Predicated region
    $region26: #{tpu_custom_call.1} parent=1 // pred_check
      _
    $region27: #{tpu_custom_call.1} parent=1 // pred_check_branch
      %62 = sbr.rel (0) target = $region29
    $region28: #{tpu_custom_call.1} parent=1 // pred_region
      %63 = dma.done [#allocation10], 16
    $region29: #{tpu_custom_call.1} parent=1 // pred_fallthru
      _
    // Predicated region
    $region30: #{tpu_custom_call.1} parent=1 // pred_check
      _
    $region31: #{tpu_custom_call.1} parent=1 // pred_check_branch
      %65 = sbr.rel (0) target = $region33
    $region32: #{tpu_custom_call.1} parent=1 // pred_region
      %66 = dma.done [#allocation6], 256
    $region33: #{tpu_custom_call.1} parent=1 // pred_fallthru
      _
    // Predicated region
    $region34: #{tpu_custom_call.1} parent=1 // pred_check
      _
    $region35: #{tpu_custom_call.1} parent=1 // pred_check_branch
      %68 = sbr.rel (0) target = $region37
    $region36: #{tpu_custom_call.1} parent=1 // pred_region
      %69 = dma.done [#allocation13], 256
    $region37: #{tpu_custom_call.1} parent=1 // pred_fallthru
      _
    %70 = sfence
    %v71 = vld [vmem:[#allocation11] sm:$0xff]
    %v72 = vld [vmem:[#allocation11 + $0x8] sm:$0xff]
    %vm73 = vcmask 261120
    %v74 = vsel %vm73, %v71, 0.0
    %75 = vadd.xlane.f32.xlu0 %v74
    %v76 = vpop.xlane.xlu0 %75
    %v77 = vsel %vm73, %v72, 0.0
    %78 = vadd.xlane.f32.xlu0 %v77
    %v79 = vpop.xlane.xlu0 %78
    %vm80 = vcmask 7168
    %81 = vst.msk [vmem:[#allocation2] sm:$0xff] %vm80, %v76
    %82 = vst.msk [vmem:[#allocation2 + $0x8] sm:$0xff] %vm80, %v79
    %v83 = vmul.f32 %v71, %v71
    %v84 = vmul.f32 %v72, %v72
    %v85 = vsel %vm73, %v83, 0.0
    %86 = vadd.xlane.f32.xlu0 %v85
    %v87 = vpop.xlane.xlu0 %86
    %v88 = vsel %vm73, %v84, 0.0
    %89 = vadd.xlane.f32.xlu0 %v88
    %v90 = vpop.xlane.xlu0 %89
    %91 = vst.msk [vmem:[#allocation3] sm:$0xff] %vm80, %v87
    %92 = vst.msk [vmem:[#allocation3 + $0x8] sm:$0xff] %vm80, %v90
    %v93 = vld [vmem:[#allocation2] sm:$0xff]
    %v94 = vld [vmem:[#allocation2 + $0x8] sm:$0xff]
    %v95 = vld [vmem:[#allocation3] sm:$0xff]
    %v96 = vld [vmem:[#allocation3 + $0x8] sm:$0xff]
    %v97 = vld [vmem:[#allocation12] sm:$0xff]
    %v98 = vld [vmem:[#allocation12 + $0x8] sm:$0xff]
    %s99 = sld [smem:[#allocation5 + $0x1]]
    %s100 = sld [smem:[#allocation5 + $0x2]]
    %s101 = sld [smem:[#allocation9]]
    %s102 = sld [smem:[#allocation9 + $0x1]]
    %s103 = sld [smem:[#allocation9 + $0x2]]
    %s104 = sld [smem:[#allocation4]]
    %v105 = vmul.f32 %v97, 32.0
    %v106 = vmul.f32 %v98, 32.0
    %v107 = vadd.f32 %v105, 1e-12
    %v108 = vadd.f32 %v106, 1e-12
    %v109 = vmul.f32 %v97, %v93
    %v110 = vmul.f32 %v98, %v94
    %v111 = vmul.f32 %v97, %v95
    %v112 = vmul.f32 %v98, %v96
    %v113 = vrcp.pop %v107
    %v114 = vmul.f32 %v109, %v113
    %v115 = vrcp.pop %v108
    %v116 = vmul.f32 %v110, %v115
    %v117 = vmul.f32 %v114, 2.0
    %v118 = vmul.f32 %v116, 2.0
    %v119 = vmul.f32 %v117, %v109
    %v120 = vmul.f32 %v118, %v110
    %v121 = vsub.f32 %v111, %v119
    %v122 = vsub.f32 %v112, %v120
    %v123 = vmul.f32 %v114, %v114
    %v124 = vmul.f32 %v116, %v116
    %v125 = vsub.f32 %v107, 1e-12
    %v126 = vsub.f32 %v108, 1e-12
    %v127 = vmul.f32 %v123, %v125
    %v128 = vmul.f32 %v124, %v126
    %v129 = vadd.f32 %v121, %v127
    %v130 = vadd.f32 %v122, %v128
    %v131 = vmax.f32 %v129, 0.0
    %v132 = vmax.f32 %v130, 0.0
    %v133 = vsub.f32 %v107, 1.0
    %v134 = vsub.f32 %v108, 1.0
    %v135 = vrcp.pop %v133
    %v136 = vmul.f32 %v131, %v135
    %v137 = vrcp.pop %v134
    %v138 = vmul.f32 %v132, %v137
    %v139 = vsel %vm80, %v125, 0.0
    %v140 = vrot.slane %v139, 4
    %v141 = vadd.f32 %v139, %v140
    %v142 = vrot.slane %v141, 2
    %v143 = vadd.f32 %v141, %v142
    %v144 = vrot.slane %v143, 1
    %v145 = vadd.f32 %v143, %v144
    %v146 = vsel %vm80, %v126, 0.0
    %v147 = vrot.slane %v146, 4
    %v148 = vadd.f32 %v146, %v147
    %v149 = vrot.slane %v148, 2
    %v150 = vadd.f32 %v148, %v149
    %v151 = vrot.slane %v150, 1
    %v152 = vadd.f32 %v150, %v151
    %v153 = vadd.f32 %v145, 1e-12
    %v154 = vadd.f32 %v152, 1e-12
    %v155 = vsel %vm80, %v109, 0.0
    %v156 = vrot.slane %v155, 4
    %v157 = vadd.f32 %v155, %v156
    %v158 = vrot.slane %v157, 2
    %v159 = vadd.f32 %v157, %v158
    %v160 = vrot.slane %v159, 1
    %v161 = vadd.f32 %v159, %v160
    %v162 = vsel %vm80, %v110, 0.0
    %v163 = vrot.slane %v162, 4
    %v164 = vadd.f32 %v162, %v163
    %v165 = vrot.slane %v164, 2
    %v166 = vadd.f32 %v164, %v165
    %v167 = vrot.slane %v166, 1
    %v168 = vadd.f32 %v166, %v167
    %v169 = vsel %vm80, %v111, 0.0
    %v170 = vrot.slane %v169, 4
    %v171 = vadd.f32 %v169, %v170
    %v172 = vrot.slane %v171, 2
    %v173 = vadd.f32 %v171, %v172
    %v174 = vrot.slane %v173, 1
    %v175 = vadd.f32 %v173, %v174
    %v176 = vsel %vm80, %v112, 0.0
    %v177 = vrot.slane %v176, 4
    %v178 = vadd.f32 %v176, %v177
    %v179 = vrot.slane %v178, 2
    %v180 = vadd.f32 %v178, %v179
    %v181 = vrot.slane %v180, 1
    %v182 = vadd.f32 %v180, %v181
    %v183 = vrcp.pop %v153
    %v184 = vmul.f32 %v161, %v183
    %v185 = vrcp.pop %v154
    %v186 = vmul.f32 %v168, %v185
    %v187 = vmul.f32 %v184, 2.0
    %v188 = vmul.f32 %v186, 2.0
    %v189 = vmul.f32 %v187, %v161
    %v190 = vmul.f32 %v188, %v168
    %v191 = vsub.f32 %v175, %v189
    %v192 = vsub.f32 %v182, %v190
    %v193 = vmul.f32 %v184, %v184
    %v194 = vmul.f32 %v186, %v186
    %v195 = vsub.f32 %v153, 1e-12
    %v196 = vsub.f32 %v154, 1e-12
    %v197 = vmul.f32 %v193, %v195
    %v198 = vmul.f32 %v194, %v196
    %v199 = vadd.f32 %v191, %v197
    %v200 = vadd.f32 %v192, %v198
    %v201 = vmax.f32 %v199, 0.0
    %v202 = vmax.f32 %v200, 0.0
    %v203 = vsub.f32 %v153, 1.0
    %v204 = vsub.f32 %v154, 1.0
    %v205 = vrcp.pop %v203
    %v206 = vmul.f32 %v201, %v205
    %v207 = vrcp.pop %v204
    %v208 = vmul.f32 %v202, %v207
    %v209 = vstv %s99
    %v210 = vmul.f32 %v209, %v114
    %v211 = vmul.f32 %v209, %v116
    %v212 = vstv %s100
    %v213 = vmul.f32 %v212, %v184
    %v214 = vmul.f32 %v212, %v186
    %v215 = vadd.f32 %v210, %v213
    %v216 = vadd.f32 %v211, %v214
    %v217 = vstv %s102
    %v218 = vmul.f32 %v217, %v136
    %v219 = vmul.f32 %v217, %v138
    %v220 = vstv %s101
    %v221 = vadd.f32 %v220, %v218
    %v222 = vadd.f32 %v220, %v219
    %v223 = vstv %s103
    %v224 = vmul.f32 %v223, %v206
    %v225 = vmul.f32 %v223, %v208
    %v226 = vadd.f32 %v221, %v224
    %v227 = vadd.f32 %v222, %v225
    %v228 = vadd.f32 %v226, 1e-12
    %v229 = vadd.f32 %v227, 1e-12
    %v230 = vrsqrt.pop %v228
    %v231 = vrsqrt.pop %v229
    %v232 = vstv %s104
    %v233 = vmul.f32 %v232, %v230
    %v234 = vmul.f32 %v232, %v231
    %235 = vst.msk [vmem:[#allocation2] sm:$0xff] %vm80, %v215
    %236 = vst.msk [vmem:[#allocation2 + $0x8] sm:$0xff] %vm80, %v216
    %237 = vst.msk [vmem:[#allocation3] sm:$0xff] %vm80, %v233
    %238 = vst.msk [vmem:[#allocation3 + $0x8] sm:$0xff] %vm80, %v234
    %v239 = vld [vmem:[#allocation11] sm:$0xff]
    %v240 = vld [vmem:[#allocation11 + $0x8] sm:$0xff]
    %v241 = vld [vmem:[#allocation2] sm:$0xff]
    %v242 = vld [vmem:[#allocation2 + $0x8] sm:$0xff]
    %v243 = vld [vmem:[#allocation3] sm:$0xff]
    %v244 = vld [vmem:[#allocation3 + $0x8] sm:$0xff]
    %246 = vset.pattern.permute.xlu0 0
    %247 = vperm.xlu0 %246, %v241
    %v248 = vpop.permute.xlu0 %247
    %251 = vset.pattern.permute.xlu0 0
    %252 = vperm.xlu0 %251, %v242
    %v253 = vpop.permute.xlu0 %252
    %v255 = vsub.f32 %v239, %v248
    %v256 = vsub.f32 %v240, %v253
    %258 = vset.pattern.permute.xlu0 0
    %259 = vperm.xlu0 %258, %v243
    %v260 = vpop.permute.xlu0 %259
    %263 = vset.pattern.permute.xlu0 0
    %264 = vperm.xlu0 %263, %v244
    %v265 = vpop.permute.xlu0 %264
    %v267 = vmul.f32 %v255, %v260
    %v268 = vmul.f32 %v256, %v265
    %269 = vst.msk [vmem:[#allocation14] sm:$0xff] %vm73, %v267
    %270 = vst.msk [vmem:[#allocation14 + $0x8] sm:$0xff] %vm73, %v268
    // Predicated region
    $region38: #{tpu_custom_call.1} parent=1 // pred_check
      _
    $region39: #{tpu_custom_call.1} parent=1 // pred_check_branch
      %272 = sbr.rel (0) target = $region41
    $region40: #{tpu_custom_call.1} parent=1 // pred_region
      %s274 = ssub.s32 256, 256
      %275 = vsyncadd [#allocation7], %s274
      %s276 = sshll.u32 [#allocation14], 4
      %s277 = int_to_ptr.vmem [resolvable:$true] %s276
      %282 = dma.vmem_to_hbm [thread:$0]  %s277, 256, %s5, [#allocation7], 128, 128, 8
    $region41: #{tpu_custom_call.1} parent=1 // pred_fallthru
      _
    // Predicated region
    $region42: #{tpu_custom_call.1} parent=1 // pred_check
      _
    $region43: #{tpu_custom_call.1} parent=1 // pred_check_branch
      %284 = sbr.rel (0) target = $region45
    $region44: #{tpu_custom_call.1} parent=1 // pred_region
      %285 = dma.done [#allocation7], 256
    $region45: #{tpu_custom_call.1} parent=1 // pred_fallthru
      _
    %286 = vsyncpa [#allocation6], 1
    %287 = vsyncpa [#allocation13], 1
    %288 = vsyncpa [#allocation7], 1
    %289 = vsyncpa [#allocation8], 1
    %290 = vsyncpa [#allocation10], 1

</llo_original>
